<compile_context>
chip_gen: v7x
topology: tpu7x:2x2x1
jax: 0.10.0
libtpu: 0.0.40
codegen_flags: <defaults>
</compile_context>

<pallas_src>
import jax
import jax.numpy as jnp
from jax.experimental import pallas as pl
from jax.experimental.pallas import tpu as pltpu


# Below this many input bytes a fused XLA reduction beats any kernel launch.
_MIN_PALLAS_BYTES = 4 << 20
# Budget for all pipelined VMEM buffers (2x input + 2x output blocks), computed on
# the *padded* tile layout.  Conservative for v7x (64 MiB physical per TC).
_PIPELINE_VMEM_BUDGET = 24 << 20
# Scoped-VMEM limit handed to Mosaic (leaves headroom above the budget).
_VMEM_LIMIT_BYTES = 40 << 20
# Keep at least this many grid steps so v7x (2 TCs) can split the "parallel" axis.
_MIN_GRID_TILES = 8
# Use the no-transpose (lane-axis reduce) path only when the reduced axis is wide
# enough that the in-vreg lane reduce stays under the HBM-DMA roofline.
_MIN_AGENTS_FOR_LANE_REDUCE = 32
# Don't bother launching a kernel for fewer rows than this (fallback handles it).
_MIN_ROWS_FOR_PALLAS = 256


def _round_up(n: int, m: int) -> int:
    return ((n + m - 1) // m) * m


def _sublane_multiple(dtype) -> int:
    # VMEM tiles pad the second-to-last dim to 8 (32-bit), 16 (16-bit), 32 (8-bit).
    return max(8, 32 // jnp.dtype(dtype).itemsize)


# --------------------------------------------------------------------------------
# Kernels
# --------------------------------------------------------------------------------
def _sum_minor_kernel(x_ref, o_ref):
    # x_ref: (tile_rows, n_agents) ; o_ref: (tile_rows, 1).  Lane-axis reduce.
    x = x_ref[...].astype(jnp.float32)
    o_ref[...] = jnp.sum(x, axis=-1, keepdims=True).astype(o_ref.dtype)


def _sum_major_kernel(x_ref, o_ref):
    # x_ref: (n_agents, tile_r) ; o_ref: (1, tile_r).  Sublane-axis reduce,
    # lane-dense output (unmasked full-width stores).
    x = x_ref[...].astype(jnp.float32)
    o_ref[...] = jnp.sum(x, axis=0, keepdims=True).astype(o_ref.dtype)


# --------------------------------------------------------------------------------
# pallas_call wrappers
# --------------------------------------------------------------------------------
def _sum_last_axis_pallas(x2d: jax.Array) -> jax.Array:
    """x2d: (rows, n_agents) in natural layout -> (rows, 1). No HBM transpose."""
    rows, n_agents = x2d.shape
    itemsize = x2d.dtype.itemsize
    sub = _sublane_multiple(x2d.dtype)

    # Padded VMEM bytes contributed by one block row: input pads n_agents to a
    # multiple of 128 lanes, the width-1 output pads to 128 lanes; both are
    # double-buffered by the pipeline.
    padded_row_bytes = 2 * (_round_up(n_agents, 128) + 128) * itemsize
    max_tile = max(sub, (_PIPELINE_VMEM_BUDGET // padded_row_bytes) // sub * sub)
    # Cap the tile so the grid keeps >= _MIN_GRID_TILES steps (v7x megacore).
    want_tile = _round_up(pl.cdiv(rows, _MIN_GRID_TILES), sub)
    tile_rows = max(sub, min(max_tile, want_tile))
    grid = (pl.cdiv(rows, tile_rows),)  # ragged last block handled by Pallas

    return pl.pallas_call(
        _sum_minor_kernel,
        out_shape=jax.ShapeDtypeStruct((rows, 1), x2d.dtype),
        grid=grid,
        in_specs=[pl.BlockSpec((tile_rows, n_agents), lambda i: (i, 0))],
        out_specs=pl.BlockSpec((tile_rows, 1), lambda i: (i, 0)),
        compiler_params=pltpu.CompilerParams(
            dimension_semantics=("parallel",),
            vmem_limit_bytes=_VMEM_LIMIT_BYTES,
        ),
    )(x2d)


def _sum_first_axis_pallas(x2d: jax.Array) -> jax.Array:
    """x2d: (n_agents, rows) lane-dense layout -> (1, rows)."""
    n_agents, rows = x2d.shape
    itemsize = x2d.dtype.itemsize
    sub = _sublane_multiple(x2d.dtype)
    padded_agents = _round_up(n_agents, sub)   # sublane padding of the short axis

    # Padded VMEM bytes per block column: input (padded_agents sublanes) plus the
    # 1-row output (pads to `sub` sublanes), both double-buffered.
    padded_col_bytes = 2 * (padded_agents + sub) * itemsize
    max_tile = max(128, (_PIPELINE_VMEM_BUDGET // padded_col_bytes) // 128 * 128)
    want_tile = _round_up(pl.cdiv(rows, _MIN_GRID_TILES), 128)
    tile_r = max(128, min(max_tile, want_tile))
    grid = (pl.cdiv(rows, tile_r),)  # ragged last block handled by Pallas

    return pl.pallas_call(
        _sum_major_kernel,
        out_shape=jax.ShapeDtypeStruct((1, rows), x2d.dtype),
        grid=grid,
        in_specs=[pl.BlockSpec((n_agents, tile_r), lambda i: (0, i))],
        out_specs=pl.BlockSpec((1, tile_r), lambda i: (0, i)),
        compiler_params=pltpu.CompilerParams(
            dimension_semantics=("parallel",),
            vmem_limit_bytes=_VMEM_LIMIT_BYTES,
        ),
    )(x2d)


# --------------------------------------------------------------------------------
# Public entry point (== VDNMixer.forward)
# --------------------------------------------------------------------------------
def vdn_mixer(agent_qs: jax.Array, dim: int = -1, states=None, *,
              min_pallas_bytes: int = _MIN_PALLAS_BYTES) -> jax.Array:
    """Sum over `dim` with keepdim=True (VDNMixer.forward)."""
    del states  # unused, as in the PyTorch reference
    ndim = agent_qs.ndim
    dim = dim % ndim
    n_agents = agent_qs.shape[dim]
    total = agent_qs.size
    rows = total // n_agents if n_agents else 0
    itemsize = agent_qs.dtype.itemsize
    nbytes = total * itemsize
    sub = _sublane_multiple(agent_qs.dtype)

    use_pallas = (
        nbytes >= min_pallas_bytes
        and n_agents > 0
        and rows >= _MIN_ROWS_FOR_PALLAS
        and jnp.issubdtype(agent_qs.dtype, jnp.floating)
        and itemsize <= 4
    )

    if use_pallas and dim == ndim - 1 and n_agents >= _MIN_AGENTS_FOR_LANE_REDUCE:
        # No-transpose path: natural (rows, n_agents) layout, reduce over lanes.
        min_block = sub * 2 * (_round_up(n_agents, 128) + 128) * itemsize
        if min_block <= _PIPELINE_VMEM_BUDGET:
            x2d = agent_qs.reshape(rows, n_agents)          # contiguous view, no copy
            out = _sum_last_axis_pallas(x2d)                # (rows, 1)
            return out.reshape(agent_qs.shape[:-1] + (1,))

    if use_pallas:
        # Lane-dense path: one HBM transpose (zero when dim == 0).
        padded_agents = _round_up(n_agents, sub)
        min_block = 128 * 2 * (padded_agents + sub) * itemsize
        if min_block <= _PIPELINE_VMEM_BUDGET:
            xt = jnp.moveaxis(agent_qs, dim, 0).reshape(n_agents, rows)
            out2d = _sum_first_axis_pallas(xt)              # (1, rows)
            lead_shape = tuple(s for a, s in enumerate(agent_qs.shape) if a != dim)
            out = out2d.reshape((1,) + lead_shape)          # free contiguous reshape
            return jnp.moveaxis(out, 0, dim)

    # Small / awkward cases: XLA's fused reduction is the right tool.
    return jnp.sum(agent_qs, axis=dim, keepdims=True)


# --------------------------------------------------------------------------------
# Self-test
# --------------------------------------------------------------------------------
if __name__ == "__main__":
    key = jax.random.PRNGKey(0)
    k1, k2, k3, k4 = jax.random.split(key, 4)

    # Case 1: tiny shape (batch=2, seq=8, n_agents=4) -> jnp.sum fallback path.
    x_small = jax.random.normal(k1, (2, 8, 4), dtype=jnp.float32)
    out_small = jax.block_until_ready(vdn_mixer(x_small, dim=-1))
    ref_small = jnp.sum(x_small, axis=-1, keepdims=True)
    assert out_small.shape == ref_small.shape, (out_small.shape, ref_small.shape)
    assert jnp.allclose(out_small, ref_small, atol=1e-6), "small-shape mismatch"

    # Case 2: f32, dim=-1, tiny n_agents -> lane-dense ("major") Pallas path
    # (single transpose), forced past the size threshold.
    x_f32 = jax.random.normal(k2, (16, 1024, 8), dtype=jnp.float32)
    out_f32 = jax.block_until_ready(vdn_mixer(x_f32, dim=-1, min_pallas_bytes=0))
    ref_f32 = jnp.sum(x_f32, axis=-1, keepdims=True)
    assert out_f32.shape == ref_f32.shape, (out_f32.shape, ref_f32.shape)
    assert jnp.allclose(out_f32, ref_f32, atol=1e-5, rtol=1e-5), "f32 major-path mismatch"

    # Case 3: bf16, reduce over a middle dim, ragged last block (rows=8000, tile=1024).
    x_bf16 = jax.random.normal(k3, (8, 4, 1000), dtype=jnp.bfloat16)
    out_bf16 = jax.block_until_ready(vdn_mixer(x_bf16, dim=1, min_pallas_bytes=0))
    ref_bf16 = jnp.sum(x_bf16.astype(jnp.float32), axis=1, keepdims=True).astype(jnp.bfloat16)
    assert out_bf16.shape == ref_bf16.shape, (out_bf16.shape, ref_bf16.shape)
    assert jnp.allclose(out_bf16.astype(jnp.float32), ref_bf16.astype(jnp.float32),
                        atol=1e-1, rtol=1e-2), "bf16 major-path mismatch"

    # Case 4: wide last axis (n_agents=256) -> no-transpose ("minor") Pallas path,
    # ragged last block (rows=4000).
    x_wide = jax.random.normal(k4, (4000, 256), dtype=jnp.float32)
    out_wide = jax.block_until_ready(vdn_mixer(x_wide, dim=-1, min_pallas_bytes=0))
    ref_wide = jnp.sum(x_wide, axis=-1, keepdims=True)
    assert out_wide.shape == ref_wide.shape, (out_wide.shape, ref_wide.shape)
    assert jnp.allclose(out_wide, ref_wide, atol=1e-3, rtol=1e-5), "f32 minor-path mismatch"

    print("KERNEL_OK")
</pallas_src>

<mosaic_0001>
module attributes {stable_mosaic.version = 11 : i64} {
  func.func @_sum_major_kernel(%arg0: i32, %arg1: memref<8x2048xf32, #tpu.memory_space<vmem>>, %arg2: memref<1x2048xf32, #tpu.memory_space<vmem>>) attributes {dimension_semantics = [#tpu.dimension_semantics<parallel>], iteration_bounds = array<i64: 8>, scalar_prefetch = 0 : i64, scratch_operands = 0 : i64, tpu.core_type = #tpu.core_type<tc>, window_params = [{transform_indices = @transform_0, window_bounds = array<i64: 8, 2048>}, {transform_indices = @transform_1, window_bounds = array<i64: 1, 2048>}]} {
    %c0 = arith.constant 0 : index
    %c0_0 = arith.constant 0 : index
    %0 = vector.load %arg1[%c0, %c0_0] : memref<8x2048xf32, #tpu.memory_space<vmem>>, vector<8x2048xf32>
    %cst = arith.constant dense<0.000000e+00> : vector<2048xf32>
    %1 = vector.multi_reduction <add>, %0, %cst [0] : vector<8x2048xf32> to vector<2048xf32>
    %2 = vector.shape_cast %1 : vector<2048xf32> to vector<1x2048xf32>
    %c0_1 = arith.constant 0 : index
    %c0_2 = arith.constant 0 : index
    %3 = vector.load %arg2[%c0_1, %c0_2] : memref<1x2048xf32, #tpu.memory_space<vmem>>, vector<1x2048xf32>
    tpu.vector_store %arg2[%c0_1, %c0_2], %2 {strides = array<i32>} : memref<1x2048xf32, #tpu.memory_space<vmem>>, vector<1x2048xf32>,
    return
  }
  func.func @transform_0(%arg0: i32) -> (i32, i32) {
    %c0_i32 = arith.constant 0 : i32
    %c0_i32_0 = arith.constant 0 : i32
    return %c0_i32, %arg0 : i32, i32
  }
  func.func @transform_1(%arg0: i32) -> (i32, i32) {
    %c0_i32 = arith.constant 0 : i32
    %c0_i32_0 = arith.constant 0 : i32
    return %c0_i32, %arg0 : i32, i32
  }
}

</mosaic_0001>

<llo_original>
// kernel: tpu_custom_call.1
$region0: #{tpu_custom_call.1}
  #allocation0 [shape = 'u32[]', space=smem, size = 0x4, offset = 0x4, fixed_abs, tag = 'smem constant byte address 0x4 - core index']
  #allocation1 [shape = 'u32[144,128]{1,0:T(1,128)}', space=vmem, size = 0x12000, scoped, tag = 'internal scratch']
  %s0 = inlined_call_operand.hbm [shape: f32[8,16384], index: 0, kind: input, shape index: {}]
  %s1 = inlined_call_operand.hbm [shape: f32[1,16384], index: 1, kind: output, shape index: {}]
  %s2 = sld [smem:[#allocation0]]
  $region41: #{tpu_custom_call.1} parent=0
    _
  %s4 = ssub.s32 1, %s2
  %s5 = scalar_select 0, %s4, %s2
  $region1: #{tpu_custom_call.1} parent=0
    #allocation2 [shape = 'u8[131072]{0}', space=vmem, size = 0x20000, scoped, tag = 'input window, operand 0']
    #allocation3 [shape = 's32[2]{0}', space=sflag, size = 0x8, scoped, tag = 'scoped memory for tpu_custom_call.1']
    #allocation4 [shape = 's32[2]{0}', space=sflag, size = 0x8, scoped, tag = 'scoped memory for tpu_custom_call.1']
    #allocation5 [shape = 'u8[16384]{0}', space=vmem, size = 0x4000, scoped, tag = 'output window, operand 0']
    %6 = vsyncpa [#allocation3], 0
    %s7 = scalar_lea.sflag [#allocation3], 1
    %8 = vsyncpa %s7, 0
    %9 = vsyncpa [#allocation4], 0
    %s10 = scalar_lea.sflag [#allocation4], 1
    %11 = vsyncpa %s10, 0
    loop: start=0, step=1, limit=10
    $region2: #{tpu_custom_call.1} parent=1 // loop_pre_header
      _
    $region3: #{tpu_custom_call.1} parent=1 // loop_header
      %s13 = sphi 0, %s17
      %p14 = scmp.ge.s32.totalorder %s13, 10
      %s23 = sphi 0, %s25
      %s26 = sphi 0, %s23
      %s27 = sphi 0, %s26
      %s43 = sphi 0, %s27
      %s49 = sphi 0, %s51
      %s52 = sphi 0, %s49
      %s53 = sphi 0, %s52
      %s69 = sphi 0, %s53
    $region4: #{tpu_custom_call.1} parent=1 // loop_header_branch
      %16 = sbr.rel (%p14) target = $region8
    $region5: #{tpu_custom_call.1} parent=1 // loop_body
      %s18 = ssub.s32 %s13, 1
      %s19 = ssub.s32 %s13, 2
      %s20 = sadd.s32 %s13, 1
      %s21 = ssub.s32 %s13, %s20
      %p22 = scmp.eq.s32.totalorder %s21, 0
      %s24 = sadd.s32 %s23, 1
      %s25 = scalar_select %p22, %s23, %s24
      %p28 = pneg %p22
      %p29 = scmp.eq.s32.totalorder %s13, 7
      %p30 = por %p28, %p29
      %p31 = scmp.ne.s32.totalorder %s23, %s26
      %p32 = scmp.eq.s32.totalorder %s13, 0
      %p33 = por %p31, %p32
      %p34 = scmp.ne.s32.totalorder %s23, %s26
      %p35 = scmp.eq.s32.totalorder %s18, 7
      %p36 = por %p34, %p35
      %p37 = scmp.ne.s32.totalorder %s26, %s27
      %p38 = scmp.eq.s32.totalorder %s18, 0
      %p39 = por %p37, %p38
      %p40 = scmp.ne.s32.totalorder %s26, %s27
      %p41 = scmp.eq.s32.totalorder %s19, 7
      %p42 = por %p40, %p41
      %p44 = scmp.ne.s32.totalorder %s27, %s43
      %p45 = scmp.eq.s32.totalorder %s19, 0
      %p46 = por %p44, %p45
      %s47 = ssub.s32 %s13, %s20
      %p48 = scmp.eq.s32.totalorder %s47, 0
      %s50 = sadd.s32 %s49, 1
      %s51 = scalar_select %p48, %s49, %s50
      %p54 = pneg %p48
      %p55 = scmp.eq.s32.totalorder %s13, 7
      %p56 = por %p54, %p55
      %p57 = scmp.ne.s32.totalorder %s49, %s52
      %p58 = scmp.eq.s32.totalorder %s13, 0
      %p59 = por %p57, %p58
      %p60 = scmp.ne.s32.totalorder %s49, %s52
      %p61 = scmp.eq.s32.totalorder %s18, 7
      %p62 = por %p60, %p61
      %p63 = scmp.ne.s32.totalorder %s52, %s53
      %p64 = scmp.eq.s32.totalorder %s18, 0
      %p65 = por %p63, %p64
      %p66 = scmp.ne.s32.totalorder %s52, %s53
      %p67 = scmp.eq.s32.totalorder %s19, 7
      %p68 = por %p66, %p67
      %p70 = scmp.ne.s32.totalorder %s53, %s69
      %p71 = scmp.eq.s32.totalorder %s19, 0
      %p72 = por %p70, %p71
      %p73 = scmp.le.s32.totalorder 1, %s13
      %p74 = scmp.lt.s32.totalorder %s13, 9
      %p75 = pnand %p73, %p74
      %p76 = pneg %p75
      // Predicated region
      $region9: #{tpu_custom_call.1} parent=5 // pred_check
        _
      $region10: #{tpu_custom_call.1} parent=5 // pred_check_branch
        %78 = sbr.rel (%p75) target = $region12
      $region11: #{tpu_custom_call.1} parent=5 // pred_region
        %s79 = ssub.s32 %s13, 1
      $region12: #{tpu_custom_call.1} parent=5 // pred_fallthru
        _
      %p80 = scmp.lt.s32.totalorder %s13, 8
      // Predicated region
      $region13: #{tpu_custom_call.1} parent=5 // pred_check
        %p81 = pneg %p80
      $region14: #{tpu_custom_call.1} parent=5 // pred_check_branch
        %83 = sbr.rel (%p81) target = $region16
      $region15: #{tpu_custom_call.1} parent=5 // pred_region
        // Predicated region
        $region17: #{tpu_custom_call.1} parent=15 // pred_check
          %p84 = pneg %p33
        $region18: #{tpu_custom_call.1} parent=15 // pred_check_branch
          %86 = sbr.rel (%p84) target = $region20
        $region19: #{tpu_custom_call.1} parent=15 // pred_region
          %s87 = sand.u32 %s23, 1
          %s88 = scalar_lea.sflag [#allocation3], %s87
          %s89 = sand.u32 %s23, 1
          %s90 = smul.addr %s89, 128
          %s91 = scalar_lea.vmem [#allocation2], %s90
          %s92 = smul.u32 16, %s13
          %s94 = ssub.s32 2048, 2048
          %95 = vsyncadd %s88, %s94
          %s96 = smul.addr %s92, 128
          %s97 = scalar_lea.hbm %s0, %s96
          %s99 = sshll.u32 %s91, 4
          %s100 = int_to_ptr.vmem [resolvable:$true] %s99
          %102 = dma.hbm_to_vmem [thread:$0]  %s97, 2048, %s100, %s88
        $region20: #{tpu_custom_call.1} parent=15 // pred_fallthru
          _
      $region16: #{tpu_custom_call.1} parent=5 // pred_fallthru
        _
      %p103 = scmp.le.s32.totalorder 1, %s13
      %p104 = scmp.lt.s32.totalorder %s13, 9
      %p105 = pnand %p103, %p104
      %p106 = pneg %p105
      // Predicated region
      $region21: #{tpu_custom_call.1} parent=5 // pred_check
        _
      $region22: #{tpu_custom_call.1} parent=5 // pred_check_branch
        %108 = sbr.rel (%p105) target = $region24
      $region23: #{tpu_custom_call.1} parent=5 // pred_region
        %s109 = ssub.s32 %s13, 1
        %s110 = sand.u32 %s26, 1
        %s111 = scalar_lea.sflag [#allocation3], %s110
        %s112 = sand.u32 %s26, 1
        %s113 = smul.addr %s112, 128
        %s114 = scalar_lea.vmem [#allocation2], %s113
        // Predicated region
        $region25: #{tpu_custom_call.1} parent=23 // pred_check
          %p115 = pneg %p39
        $region26: #{tpu_custom_call.1} parent=23 // pred_check_branch
          %117 = sbr.rel (%p115) target = $region28
        $region27: #{tpu_custom_call.1} parent=23 // pred_region
          %118 = dma.done %s111, 2048
        $region28: #{tpu_custom_call.1} parent=23 // pred_fallthru
          _
        %s119 = sand.u32 %s26, 1
        %s120 = scalar_lea.sflag [#allocation3], %s119
        %s121 = sand.u32 %s26, 1
        %s122 = smul.addr %s121, 128
        %s123 = scalar_lea.vmem [#allocation2], %s122
        %p124 = pneg %p39
        %p125 = pneg %p36
        %p126 = pneg %p65
        %p127 = pneg %p62
        %s128 = sand.u32 %s52, 1
        %s129 = scalar_lea.sflag [#allocation4], %s128
        %s130 = sand.u32 %s52, 1
        %s131 = smul.addr %s130, 16
        %s132 = scalar_lea.vmem [#allocation5], %s131
        %s133 = smul.u32 16, %s18
        %s134 = smul.u32 16, %s18
        %v135 = vld [vmem:[%s114] sm:$0xff]
        %v136 = vld [vmem:[%s114 + $0x8] sm:$0xff]
        %v137 = vld [vmem:[%s114 + $0x10] sm:$0xff]
        %v138 = vld [vmem:[%s114 + $0x18] sm:$0xff]
        %v139 = vld [vmem:[%s114 + $0x20] sm:$0xff]
        %v140 = vld [vmem:[%s114 + $0x28] sm:$0xff]
        %v141 = vld [vmem:[%s114 + $0x30] sm:$0xff]
        %v142 = vld [vmem:[%s114 + $0x38] sm:$0xff]
        %v143 = vld [vmem:[%s114 + $0x40] sm:$0xff]
        %v144 = vld [vmem:[%s114 + $0x48] sm:$0xff]
        %v145 = vld [vmem:[%s114 + $0x50] sm:$0xff]
        %v146 = vld [vmem:[%s114 + $0x58] sm:$0xff]
        %v147 = vld [vmem:[%s114 + $0x60] sm:$0xff]
        %v148 = vld [vmem:[%s114 + $0x68] sm:$0xff]
        %v149 = vld [vmem:[%s114 + $0x70] sm:$0xff]
        %v150 = vld [vmem:[%s114 + $0x78] sm:$0xff]
        %v151 = vrot.slane %v135, 4
        %v152 = vadd.f32 %v135, %v151
        %v153 = vrot.slane %v152, 2
        %v154 = vadd.f32 %v152, %v153
        %v155 = vrot.slane %v154, 1
        %v156 = vadd.f32 %v154, %v155
        %v157 = vrot.slane %v136, 4
        %v158 = vadd.f32 %v136, %v157
        %v159 = vrot.slane %v158, 2
        %v160 = vadd.f32 %v158, %v159
        %v161 = vrot.slane %v160, 1
        %v162 = vadd.f32 %v160, %v161
        %v163 = vrot.slane %v137, 4
        %v164 = vadd.f32 %v137, %v163
        %v165 = vrot.slane %v164, 2
        %v166 = vadd.f32 %v164, %v165
        %v167 = vrot.slane %v166, 1
        %v168 = vadd.f32 %v166, %v167
        %v169 = vrot.slane %v138, 4
        %v170 = vadd.f32 %v138, %v169
        %v171 = vrot.slane %v170, 2
        %v172 = vadd.f32 %v170, %v171
        %v173 = vrot.slane %v172, 1
        %v174 = vadd.f32 %v172, %v173
        %v175 = vrot.slane %v139, 4
        %v176 = vadd.f32 %v139, %v175
        %v177 = vrot.slane %v176, 2
        %v178 = vadd.f32 %v176, %v177
        %v179 = vrot.slane %v178, 1
        %v180 = vadd.f32 %v178, %v179
        %v181 = vrot.slane %v140, 4
        %v182 = vadd.f32 %v140, %v181
        %v183 = vrot.slane %v182, 2
        %v184 = vadd.f32 %v182, %v183
        %v185 = vrot.slane %v184, 1
        %v186 = vadd.f32 %v184, %v185
        %v187 = vrot.slane %v141, 4
        %v188 = vadd.f32 %v141, %v187
        %v189 = vrot.slane %v188, 2
        %v190 = vadd.f32 %v188, %v189
        %v191 = vrot.slane %v190, 1
        %v192 = vadd.f32 %v190, %v191
        %v193 = vrot.slane %v142, 4
        %v194 = vadd.f32 %v142, %v193
        %v195 = vrot.slane %v194, 2
        %v196 = vadd.f32 %v194, %v195
        %v197 = vrot.slane %v196, 1
        %v198 = vadd.f32 %v196, %v197
        %v199 = vrot.slane %v143, 4
        %v200 = vadd.f32 %v143, %v199
        %v201 = vrot.slane %v200, 2
        %v202 = vadd.f32 %v200, %v201
        %v203 = vrot.slane %v202, 1
        %v204 = vadd.f32 %v202, %v203
        %v205 = vrot.slane %v144, 4
        %v206 = vadd.f32 %v144, %v205
        %v207 = vrot.slane %v206, 2
        %v208 = vadd.f32 %v206, %v207
        %v209 = vrot.slane %v208, 1
        %v210 = vadd.f32 %v208, %v209
        %v211 = vrot.slane %v145, 4
        %v212 = vadd.f32 %v145, %v211
        %v213 = vrot.slane %v212, 2
        %v214 = vadd.f32 %v212, %v213
        %v215 = vrot.slane %v214, 1
        %v216 = vadd.f32 %v214, %v215
        %v217 = vrot.slane %v146, 4
        %v218 = vadd.f32 %v146, %v217
        %v219 = vrot.slane %v218, 2
        %v220 = vadd.f32 %v218, %v219
        %v221 = vrot.slane %v220, 1
        %v222 = vadd.f32 %v220, %v221
        %v223 = vrot.slane %v147, 4
        %v224 = vadd.f32 %v147, %v223
        %v225 = vrot.slane %v224, 2
        %v226 = vadd.f32 %v224, %v225
        %v227 = vrot.slane %v226, 1
        %v228 = vadd.f32 %v226, %v227
        %v229 = vrot.slane %v148, 4
        %v230 = vadd.f32 %v148, %v229
        %v231 = vrot.slane %v230, 2
        %v232 = vadd.f32 %v230, %v231
        %v233 = vrot.slane %v232, 1
        %v234 = vadd.f32 %v232, %v233
        %v235 = vrot.slane %v149, 4
        %v236 = vadd.f32 %v149, %v235
        %v237 = vrot.slane %v236, 2
        %v238 = vadd.f32 %v236, %v237
        %v239 = vrot.slane %v238, 1
        %v240 = vadd.f32 %v238, %v239
        %v241 = vrot.slane %v150, 4
        %v242 = vadd.f32 %v150, %v241
        %v243 = vrot.slane %v242, 2
        %v244 = vadd.f32 %v242, %v243
        %v245 = vrot.slane %v244, 1
        %v246 = vadd.f32 %v244, %v245
        %v263 = vcombine.low %v156, %v162
        %v264 = vcombine.low %v168, %v174
        %v265 = vcombine.low %v180, %v186
        %v266 = vcombine.low %v192, %v198
        %v268 = vunpack.c.l.s4 1966171168
        %v269 = vunpack.c.0.s8 %v268
        %v270 = vlaneseq
        %v271 = vshrl.u32 %v270, 7
        %v272 = vsub.s32 %v269, %v271
        %v273 = vrot.slane %v263, %v272
        %v275 = vunpack.c.l.s4 1966171168
        %v276 = vunpack.c.0.s8 %v275
        %v277 = vlaneseq
        %v278 = vshrl.u32 %v277, 7
        %v279 = vsub.s32 %v276, %v278
        %v280 = vrot.slane %v264, %v279
        %v282 = vunpack.c.l.s4 1966171168
        %v283 = vunpack.c.0.s8 %v282
        %v284 = vlaneseq
        %v285 = vshrl.u32 %v284, 7
        %v286 = vsub.s32 %v283, %v285
        %v287 = vrot.slane %v265, %v286
        %v289 = vunpack.c.l.s4 1966171168
        %v290 = vunpack.c.0.s8 %v289
        %v291 = vlaneseq
        %v292 = vshrl.u32 %v291, 7
        %v293 = vsub.s32 %v290, %v292
        %v294 = vrot.slane %v266, %v293
        %v295 = vcombine.low %v273, %v280
        %v296 = vcombine.low %v287, %v294
        %v298 = vunpack.c.l.s4 1966171168
        %v299 = vunpack.c.0.s8 %v298
        %v300 = vlaneseq
        %v301 = vshrl.u32 %v300, 7
        %v302 = vsub.s32 %v299, %v301
        %v303 = vrot.slane %v295, %v302
        %v305 = vunpack.c.l.s4 1966171168
        %v306 = vunpack.c.0.s8 %v305
        %v307 = vlaneseq
        %v308 = vshrl.u32 %v307, 7
        %v309 = vsub.s32 %v306, %v308
        %v310 = vrot.slane %v296, %v309
        %v311 = vcombine.low %v303, %v310
        %v312 = vcombine.low %v204, %v210
        %v313 = vcombine.low %v216, %v222
        %v314 = vcombine.low %v228, %v234
        %v315 = vcombine.low %v240, %v246
        %v317 = vunpack.c.l.s4 1966171168
        %v318 = vunpack.c.0.s8 %v317
        %v319 = vlaneseq
        %v320 = vshrl.u32 %v319, 7
        %v321 = vsub.s32 %v318, %v320
        %v322 = vrot.slane %v312, %v321
        %v324 = vunpack.c.l.s4 1966171168
        %v325 = vunpack.c.0.s8 %v324
        %v326 = vlaneseq
        %v327 = vshrl.u32 %v326, 7
        %v328 = vsub.s32 %v325, %v327
        %v329 = vrot.slane %v313, %v328
        %v331 = vunpack.c.l.s4 1966171168
        %v332 = vunpack.c.0.s8 %v331
        %v333 = vlaneseq
        %v334 = vshrl.u32 %v333, 7
        %v335 = vsub.s32 %v332, %v334
        %v336 = vrot.slane %v314, %v335
        %v338 = vunpack.c.l.s4 1966171168
        %v339 = vunpack.c.0.s8 %v338
        %v340 = vlaneseq
        %v341 = vshrl.u32 %v340, 7
        %v342 = vsub.s32 %v339, %v341
        %v343 = vrot.slane %v315, %v342
        %v344 = vcombine.low %v322, %v329
        %v345 = vcombine.low %v336, %v343
        %v347 = vunpack.c.l.s4 1966171168
        %v348 = vunpack.c.0.s8 %v347
        %v349 = vlaneseq
        %v350 = vshrl.u32 %v349, 7
        %v351 = vsub.s32 %v348, %v350
        %v352 = vrot.slane %v344, %v351
        %v354 = vunpack.c.l.s4 1966171168
        %v355 = vunpack.c.0.s8 %v354
        %v356 = vlaneseq
        %v357 = vshrl.u32 %v356, 7
        %v358 = vsub.s32 %v355, %v357
        %v359 = vrot.slane %v345, %v358
        %v360 = vcombine.low %v352, %v359
        %363 = vst [vmem:[%s132] sm:$0xff] %v311
        %364 = vst [vmem:[%s132 + $0x8] sm:$0xff] %v360
        %s365 = sand.u32 %s52, 1
        %s366 = scalar_lea.sflag [#allocation4], %s365
        %s367 = sand.u32 %s52, 1
        %s368 = smul.addr %s367, 16
        %s369 = scalar_lea.vmem [#allocation5], %s368
        // Predicated region
        $region29: #{tpu_custom_call.1} parent=23 // pred_check
          %p370 = pneg %p62
        $region30: #{tpu_custom_call.1} parent=23 // pred_check_branch
          %372 = sbr.rel (%p370) target = $region32
        $region31: #{tpu_custom_call.1} parent=23 // pred_region
          %s373 = smul.u32 16, %s18
          %s375 = ssub.s32 256, 256
          %376 = vsyncadd %s366, %s375
          %s377 = smul.addr %s373, 16
          %s378 = scalar_lea.hbm %s1, %s377
          %s380 = sshll.u32 %s369, 4
          %s381 = int_to_ptr.vmem [resolvable:$true] %s380
          %383 = dma.vmem_to_hbm [thread:$0]  %s381, 256, %s378, %s366
        $region32: #{tpu_custom_call.1} parent=23 // pred_fallthru
          _
      $region24: #{tpu_custom_call.1} parent=5 // pred_fallthru
        _
      %p384 = scmp.le.s32.totalorder 2, %s13
      // Predicated region
      $region33: #{tpu_custom_call.1} parent=5 // pred_check
        %p385 = pneg %p384
      $region34: #{tpu_custom_call.1} parent=5 // pred_check_branch
        %387 = sbr.rel (%p385) target = $region36
      $region35: #{tpu_custom_call.1} parent=5 // pred_region
        %s388 = ssub.s32 %s13, 2
        // Predicated region
        $region37: #{tpu_custom_call.1} parent=35 // pred_check
          %p389 = pneg %p68
        $region38: #{tpu_custom_call.1} parent=35 // pred_check_branch
          %391 = sbr.rel (%p389) target = $region40
        $region39: #{tpu_custom_call.1} parent=35 // pred_region
          %s392 = sand.u32 %s53, 1
          %s393 = scalar_lea.sflag [#allocation4], %s392
          %s394 = sand.u32 %s53, 1
          %s395 = smul.addr %s394, 16
          %s396 = scalar_lea.vmem [#allocation5], %s395
          %397 = dma.done %s393, 256
        $region40: #{tpu_custom_call.1} parent=35 // pred_fallthru
          _
      $region36: #{tpu_custom_call.1} parent=5 // pred_fallthru
        _
    $region6: #{tpu_custom_call.1} parent=1 // loop_footer
      %s17 = sadd.s32 1, %s13
    $region7: #{tpu_custom_call.1} parent=1 // loop_footer_branch
      %12 = sbr.rel target = $region3
    $region8: #{tpu_custom_call.1} parent=1 // loop_exit
      _
    %398 = vsyncpa [#allocation3], 1
    %s399 = scalar_lea.sflag [#allocation3], 1
    %400 = vsyncpa %s399, 1
    %401 = vsyncpa [#allocation4], 1
    %s402 = scalar_lea.sflag [#allocation4], 1
    %403 = vsyncpa %s402, 1

</llo_original>
